<compile_context>
chip_gen: v6e
topology: v6e:2x2x1
jax: 0.10.0
libtpu: 0.0.40
codegen_flags: <defaults>
</compile_context>

<pallas_src>
import functools

import jax
import jax.numpy as jnp
from jax.experimental import pallas as pl
from jax.experimental.pallas import tpu as pltpu

_EPS = 1e-10
_LANES = 128
_ROW_ALIGN = 16             # bf16 sublane tile
_MAX_SUB_ROWS = 256         # in-kernel sub-chunk rows (bounds temp VMEM/vregs)
_DEFAULT_MAX_BLOCK_ROWS = 2048


def _cdiv(a, b):
    return (a + b - 1) // b


def _round_up(a, b):
    return _cdiv(a, b) * b


def _default_num_partials():
    # A second resident output block only buys anything on multi-TensorCore
    # chips (v7x); on single-TC v5e/v6e the grid runs sequentially anyway.
    try:
        kind = jax.devices()[0].device_kind.lower()
    except Exception:
        return 1
    return 2 if "v7" in kind else 1


def _atan_pos(x):
    """arctan for non-negative x (box aspect ratios are >= 0).

    Cephes-style range-reduced polynomial (~1e-7 abs error in f32).  The two
    range-reduction divisions are merged into a single EUP reciprocal
    (num/den selected per element), so x == 0 never produces an inf and only
    one EUP push is issued per call."""
    t3p8 = jnp.float32(2.414213562373095)     # tan(3*pi/8)
    tp8 = jnp.float32(0.4142135623730950)     # tan(pi/8)
    big = x > t3p8
    mid = x > tp8
    num = jnp.where(big, jnp.float32(-1.0), jnp.where(mid, x - 1.0, x))
    den = jnp.where(big, x, jnp.where(mid, x + 1.0, jnp.float32(1.0)))
    xr = num * pl.reciprocal(den, approx=True)
    y0 = jnp.where(big, jnp.float32(jnp.pi / 2),
                   jnp.where(mid, jnp.float32(jnp.pi / 4), jnp.float32(0.0)))
    z = xr * xr
    p = ((jnp.float32(8.05374449538e-2) * z - jnp.float32(1.38776856032e-1)) * z
         + jnp.float32(1.99777106478e-1)) * z - jnp.float32(3.33329491539e-1)
    return y0 + p * z * xr + xr


def _yolo_loss_kernel(slab_ref, pc_ref, out_ref, *, lambda_cord, lambda_no_obj,
                      sub_rows, n_sub):
    # slab_ref: (br, 10*128) bf16, channels [px,py,pw,ph, tx,ty,tw,th, tc, obj]
    # pc_ref  : (br, 128)    f32, predicted objectness (kept f32 for BCE logs)
    # out_ref : (8, 128)     f32, resident accumulator for this parallel slot
    @pl.when(pl.program_id(1) == 0)
    def _():
        out_ref[...] = jnp.zeros_like(out_ref)

    f32 = jnp.float32
    align = sub_rows & (-sub_rows)            # largest power-of-two divisor

    @pl.loop(0, n_sub)
    def _(s):
        r0 = pl.multiple_of(s * sub_rows, align)
        rows = pl.ds(r0, sub_rows)

        def ch(c):
            return slab_ref[rows, pl.ds(c * _LANES, _LANES)].astype(f32)

        # ---- BCE on objectness (short live ranges; torch BCELoss clamps the
        #      log terms at -100) --------------------------------------------
        pc = pc_ref[rows, :]
        tc = ch(8)
        obj = ch(9)
        log_p = jnp.maximum(jnp.log(pc), -100.0)
        log_1mp = jnp.maximum(jnp.log(1.0 - pc), -100.0)
        bce = -(tc * log_p + (1.0 - tc) * log_1mp)
        # obj*bce + lambda_no_obj*(1-obj)*bce
        contrib = (obj + lambda_no_obj * (1.0 - obj)) * bce

        # ---- CIoU loss: centers/dist first, corners consumed per axis ------
        px, tx = ch(0), ch(4)
        py, ty = ch(1), ch(5)
        dx = tx - px
        dy = ty - py
        sq_dist = dx * dx + dy * dy

        pw, tw = ch(2), ch(6)
        hpw = pw * 0.5
        htw = tw * 0.5
        px1 = px - hpw
        px2 = px + hpw
        tx1 = tx - htw
        tx2 = tx + htw
        iw = jnp.minimum(px2, tx2) - jnp.maximum(px1, tx1)
        ew = jnp.maximum(px2, tx2) - jnp.minimum(px1, tx1)

        ph_, th_ = ch(3), ch(7)
        hph = ph_ * 0.5
        hth = th_ * 0.5
        py1 = py - hph
        py2 = py + hph
        ty1 = ty - hth
        ty2 = ty + hth
        ih = jnp.minimum(py2, ty2) - jnp.maximum(py1, ty1)
        eh = jnp.maximum(py2, ty2) - jnp.minimum(py1, ty1)

        inter = jnp.maximum(iw, 0.0) * jnp.maximum(ih, 0.0)
        union = pw * ph_ + tw * th_ - inter
        iou = inter * pl.reciprocal(union + _EPS, approx=True)

        dist_loss = sq_dist * pl.reciprocal(ew * ew + eh * eh + _EPS, approx=True)

        rt = tw * pl.reciprocal(th_ + _EPS, approx=True)
        rp = pw * pl.reciprocal(ph_ + _EPS, approx=True)
        datan = _atan_pos(rt) - _atan_pos(rp)
        v = 0.40528 * datan * datan
        # Faithful to torch: no epsilon in the alpha denominator (0/0 only for
        # an exact box match, iou == 1 and v == 0).
        alpha = v * pl.reciprocal(1.0 - iou + v, approx=True)
        ciou = 1.0 - iou + dist_loss + alpha * v

        contrib = contrib + (lambda_cord * obj) * ciou          # (sub_rows, 128)

        # Fold the row axis onto the resident (8,128) accumulator (pure VPU
        # adds; no per-step cross-lane reduction, no masked scalar stores).
        out_ref[...] += jnp.sum(contrib.reshape(sub_rows // 8, 8, _LANES), axis=0)


def yolo_loss(predictions, targets, lambda_cord, lambda_obj, lambda_no_obj,
              anchor_nos, *, max_block_rows=_DEFAULT_MAX_BLOCK_ROWS,
              num_partials=None):
    """Pallas implementation of YoloLoss.forward (lambda_obj unused, as in torch)."""
    del lambda_obj  # stored but never used by the reference forward()
    if num_partials is None:
        num_partials = _default_num_partials()

    m, w, h, d = targets.shape
    c = d // anchor_nos
    assert c >= 5, "each anchor must carry at least x, y, w, h, objectness"
    n = m * w * h * anchor_nos

    p = predictions.reshape(n, c).astype(jnp.float32)
    t = targets.reshape(n, c).astype(jnp.float32)
    # object_present mask: any nonzero entry across the FULL per-anchor vector,
    # computed from the full-precision targets (before any downcast).
    obj = jnp.any(t != 0, axis=-1).astype(jnp.float32)           # (n,)

    p5 = p[:, :5]
    t5 = t[:, :5]

    rows = _cdiv(n, _LANES)
    # Padding-free tiling: fix the step count from the max block size, then
    # shrink the block rows to fit (pad is at most num_partials*steps*16 rows).
    steps = max(1, _cdiv(rows, num_partials * max_block_rows))
    br = max(_ROW_ALIGN, _round_up(_cdiv(rows, num_partials * steps), _ROW_ALIGN))
    rows_padded = num_partials * steps * br
    pad = rows_padded * _LANES - n

    # In-kernel sub-chunk rows: largest multiple of 16 <= 256 that divides br.
    sub_rows = _ROW_ALIGN
    for cand in range(min(_MAX_SUB_ROWS, br), _ROW_ALIGN - 1, -_ROW_ALIGN):
        if br % cand == 0:
            sub_rows = cand
            break
    n_sub = br // sub_rows

    if pad:
        # Zero padding contributes exactly 0 to every loss term
        # (obj = 0, bce(0, 0) = 0, obj * ciou = 0).
        p5 = jnp.pad(p5, ((0, pad), (0, 0)))
        t5 = jnp.pad(t5, ((0, pad), (0, 0)))
        obj = jnp.pad(obj, ((0, pad),))

    def plane(col):
        return col.reshape(rows_padded, _LANES)

    # Single packed bf16 slab -> one contiguous DMA per grid step.  The
    # objectness prediction stays f32 in a tiny side slab (BCE log precision).
    slab = jnp.stack(
        [plane(p5[:, 0]), plane(p5[:, 1]), plane(p5[:, 2]), plane(p5[:, 3]),
         plane(t5[:, 0]), plane(t5[:, 1]), plane(t5[:, 2]), plane(t5[:, 3]),
         plane(t5[:, 4]), plane(obj)],
        axis=1).astype(jnp.bfloat16).reshape(rows_padded, 10 * _LANES)
    pc_slab = plane(p5[:, 4])                                    # f32

    kernel = functools.partial(
        _yolo_loss_kernel,
        lambda_cord=float(lambda_cord), lambda_no_obj=float(lambda_no_obj),
        sub_rows=sub_rows, n_sub=n_sub)

    def in_idx(ci, i):
        return (ci * steps + i, 0)

    partials = pl.pallas_call(
        kernel,
        out_shape=jax.ShapeDtypeStruct((num_partials * 8, _LANES), jnp.float32),
        grid_spec=pltpu.PrefetchScalarGridSpec(
            num_scalar_prefetch=0,
            grid=(num_partials, steps),
            in_specs=[
                pl.BlockSpec((br, 10 * _LANES), in_idx),
                pl.BlockSpec((br, _LANES), in_idx),
            ],
            out_specs=pl.BlockSpec((8, _LANES), lambda ci, i: (ci, 0)),
        ),
        compiler_params=pltpu.CompilerParams(
            dimension_semantics=("parallel", "arbitrary"),
            vmem_limit_bytes=48 * 1024 * 1024),
    )(slab, pc_slab)

    # TODO(synk): the channel repack above is still one extra fused XLA pass
    # over the 5 used channels; eliminating it entirely needs the producer to
    # emit channel-major slabs (or an in-kernel de-interleave from (n, C)).
    return jnp.sum(partials) / m


# ---------------------------------------------------------------------------
# Pure-JAX reference (mirrors the PyTorch code) used for a correctness check.
# ---------------------------------------------------------------------------
def yolo_loss_ref(predictions, targets, lambda_cord, lambda_obj, lambda_no_obj,
                  anchor_nos):
    del lambda_obj
    m, w, h, d = targets.shape
    c = d // anchor_nos
    p = predictions.reshape(m, w, h, anchor_nos, c).astype(jnp.float32)
    t = targets.reshape(m, w, h, anchor_nos, c).astype(jnp.float32)
    obj = jnp.any(t != 0, axis=-1).astype(jnp.float32)
    noobj = 1.0 - obj

    def coords(b):
        return jnp.stack([b[..., 0] - b[..., 2] / 2, b[..., 1] - b[..., 3] / 2,
                          b[..., 0] + b[..., 2] / 2, b[..., 1] + b[..., 3] / 2],
                         axis=-1)

    pc_, tc_ = coords(p), coords(t)
    ix1 = jnp.maximum(pc_[..., 0], tc_[..., 0])
    iy1 = jnp.maximum(pc_[..., 1], tc_[..., 1])
    ix2 = jnp.minimum(pc_[..., 2], tc_[..., 2])
    iy2 = jnp.minimum(pc_[..., 3], tc_[..., 3])
    inter = jnp.maximum(ix2 - ix1, 0.0) * jnp.maximum(iy2 - iy1, 0.0)
    union = p[..., 2] * p[..., 3] + t[..., 2] * t[..., 3] - inter
    iou = inter / (union + _EPS)
    sq_dist = (t[..., 0] - p[..., 0]) ** 2 + (t[..., 1] - p[..., 1]) ** 2
    mnx1 = jnp.minimum(pc_[..., 0], tc_[..., 0])
    mny1 = jnp.minimum(pc_[..., 1], tc_[..., 1])
    mxx2 = jnp.maximum(pc_[..., 2], tc_[..., 2])
    mxy2 = jnp.maximum(pc_[..., 3], tc_[..., 3])
    sq_diag = (mxx2 - mnx1) ** 2 + (mxy2 - mny1) ** 2
    dist_loss = sq_dist / (sq_diag + _EPS)
    v = 0.40528 * (jnp.arctan(t[..., 2] / (t[..., 3] + _EPS))
                   - jnp.arctan(p[..., 2] / (p[..., 3] + _EPS))) ** 2
    alpha = v / (1.0 - iou + v)
    ciou = 1.0 - iou + dist_loss + alpha * v

    logp = jnp.maximum(jnp.log(p[..., 4]), -100.0)
    log1mp = jnp.maximum(jnp.log(1.0 - p[..., 4]), -100.0)
    bce = -(t[..., 4] * logp + (1.0 - t[..., 4]) * log1mp)

    loss = (lambda_cord * jnp.sum(obj * ciou)
            + jnp.sum(obj * bce)
            + lambda_no_obj * jnp.sum(noobj * bce))
    return loss / m


if __name__ == "__main__":
    key = jax.random.PRNGKey(0)
    m, w, h, A, C = 2, 8, 8, 3, 5            # anchor_data = A*C = 15
    lambda_cord, lambda_obj, lambda_no_obj = 5.0, 1.0, 0.5

    k1, k2, k3 = jax.random.split(key, 3)
    # predictions: all channels in (0,1) (objectness must be a probability)
    predictions = jax.nn.sigmoid(
        jax.random.normal(k1, (m, w, h, A * C), jnp.float32))
    # targets: ~30% of anchor cells carry a box (x,y,w,h in (0,1), obj=1)
    obj_mask = (jax.random.uniform(k2, (m, w, h, A)) < 0.3).astype(jnp.float32)
    boxes = jax.random.uniform(k3, (m, w, h, A, 4), minval=0.05, maxval=0.95)
    tgt5 = jnp.concatenate([boxes, jnp.ones((m, w, h, A, 1))], axis=-1)
    targets = (tgt5 * obj_mask[..., None]).reshape(m, w, h, A * C).astype(jnp.float32)

    loss_fn = jax.jit(functools.partial(
        yolo_loss, lambda_cord=lambda_cord, lambda_obj=lambda_obj,
        lambda_no_obj=lambda_no_obj, anchor_nos=A))
    loss = jax.block_until_ready(loss_fn(predictions, targets))

    ref = yolo_loss_ref(predictions, targets, lambda_cord, lambda_obj,
                        lambda_no_obj, A)
    # Tolerance covers the deliberate bf16 downcast of the box channels
    # (<~0.5% relative); the objectness/BCE path is kept in f32.
    assert jnp.isfinite(loss), float(loss)
    assert jnp.allclose(loss, ref, rtol=2e-2, atol=2e-2), (float(loss), float(ref))
    print("KERNEL_OK")
</pallas_src>

<mosaic_0001>
module attributes {stable_mosaic.version = 11 : i64} {
  func.func @_yolo_loss_kernel(%arg0: i32, %arg1: i32, %arg2: memref<16x1280xbf16, #tpu.memory_space<vmem>>, %arg3: memref<16x128xf32, #tpu.memory_space<vmem>>, %arg4: memref<8x128xf32, #tpu.memory_space<vmem>>) attributes {dimension_semantics = [#tpu.dimension_semantics<parallel>, #tpu.dimension_semantics<arbitrary>], iteration_bounds = array<i64: 1, 1>, scalar_prefetch = 0 : i64, scratch_operands = 0 : i64, tpu.core_type = #tpu.core_type<tc>, window_params = [{transform_indices = @transform_0, window_bounds = array<i64: 16, 1280>}, {transform_indices = @transform_1, window_bounds = array<i64: 16, 128>}, {transform_indices = @transform_2, window_bounds = array<i64: 8, 128>}]} {
    %c0_i32 = arith.constant 0 : i32
    %0 = arith.cmpi eq, %arg1, %c0_i32 : i32
    %1 = arith.extui %0 : i1 to i32
    %c0_i32_0 = arith.constant 0 : i32
    %2 = arith.cmpi ne, %1, %c0_i32_0 : i32
    scf.if %2 {
      %cst_56 = arith.constant 0.000000e+00 : f32
      %216 = vector.broadcast %cst_56 : f32 to vector<8x128xf32>
      %c0_57 = arith.constant 0 : index
      %c0_58 = arith.constant 0 : index
      %217 = vector.load %arg4[%c0_57, %c0_58] : memref<8x128xf32, #tpu.memory_space<vmem>>, vector<8x128xf32>
      tpu.vector_store %arg4[%c0_57, %c0_58], %216 {strides = array<i32>} : memref<8x128xf32, #tpu.memory_space<vmem>>, vector<8x128xf32>,
    } else {
    }
    %c0_i32_1 = arith.constant 0 : i32
    %c1_i32 = arith.constant 1 : i32
    %3 = arith.muli %c0_i32_1, %c1_i32 : i32
    %c0_i32_2 = arith.constant 0 : i32
    %4 = arith.addi %c0_i32_2, %3 : i32
    %c16_i32 = arith.constant 16 : i32
    %5 = arith.muli %4, %c16_i32 : i32
    %6 = tpu.assume_multiple %5, 16 : i32
    %7 = arith.index_cast %6 : i32 to index
    %c0 = arith.constant 0 : index
    %8 = vector.load %arg3[%7, %c0] : memref<16x128xf32, #tpu.memory_space<vmem>>, vector<16x128xf32>
    %9 = arith.index_cast %6 : i32 to index
    %c1024 = arith.constant 1024 : index
    %10 = vector.load %arg2[%9, %c1024] : memref<16x1280xbf16, #tpu.memory_space<vmem>>, vector<16x128xbf16>
    %11 = arith.extf %10 : vector<16x128xbf16> to vector<16x128xf32>
    %12 = arith.index_cast %6 : i32 to index
    %c1152 = arith.constant 1152 : index
    %13 = vector.load %arg2[%12, %c1152] : memref<16x1280xbf16, #tpu.memory_space<vmem>>, vector<16x128xbf16>
    %14 = arith.extf %13 : vector<16x128xbf16> to vector<16x128xf32>
    %15 = math.log %8 : vector<16x128xf32>
    %cst = arith.constant -1.000000e+02 : f32
    %16 = vector.broadcast %cst : f32 to vector<16x128xf32>
    %17 = arith.maximumf %15, %16 : vector<16x128xf32>
    %cst_3 = arith.constant 1.000000e+00 : f32
    %18 = vector.broadcast %cst_3 : f32 to vector<16x128xf32>
    %19 = arith.subf %18, %8 : vector<16x128xf32>
    %20 = math.log %19 : vector<16x128xf32>
    %cst_4 = arith.constant -1.000000e+02 : f32
    %21 = vector.broadcast %cst_4 : f32 to vector<16x128xf32>
    %22 = arith.maximumf %20, %21 : vector<16x128xf32>
    %23 = arith.mulf %11, %17 : vector<16x128xf32>
    %cst_5 = arith.constant 1.000000e+00 : f32
    %24 = vector.broadcast %cst_5 : f32 to vector<16x128xf32>
    %25 = arith.subf %24, %11 : vector<16x128xf32>
    %26 = arith.mulf %25, %22 : vector<16x128xf32>
    %27 = arith.addf %23, %26 : vector<16x128xf32>
    %cst_6 = arith.constant 0.000000e+00 : f32
    %28 = vector.broadcast %cst_6 : f32 to vector<16x128xf32>
    %29 = arith.subf %28, %27 : vector<16x128xf32>
    %cst_7 = arith.constant 1.000000e+00 : f32
    %30 = vector.broadcast %cst_7 : f32 to vector<16x128xf32>
    %31 = arith.subf %30, %14 : vector<16x128xf32>
    %cst_8 = arith.constant 5.000000e-01 : f32
    %32 = vector.broadcast %cst_8 : f32 to vector<16x128xf32>
    %33 = arith.mulf %32, %31 : vector<16x128xf32>
    %34 = arith.addf %14, %33 : vector<16x128xf32>
    %35 = arith.mulf %34, %29 : vector<16x128xf32>
    %36 = arith.index_cast %6 : i32 to index
    %c0_9 = arith.constant 0 : index
    %37 = vector.load %arg2[%36, %c0_9] : memref<16x1280xbf16, #tpu.memory_space<vmem>>, vector<16x128xbf16>
    %38 = arith.extf %37 : vector<16x128xbf16> to vector<16x128xf32>
    %39 = arith.index_cast %6 : i32 to index
    %c512 = arith.constant 512 : index
    %40 = vector.load %arg2[%39, %c512] : memref<16x1280xbf16, #tpu.memory_space<vmem>>, vector<16x128xbf16>
    %41 = arith.extf %40 : vector<16x128xbf16> to vector<16x128xf32>
    %42 = arith.index_cast %6 : i32 to index
    %c128 = arith.constant 128 : index
    %43 = vector.load %arg2[%42, %c128] : memref<16x1280xbf16, #tpu.memory_space<vmem>>, vector<16x128xbf16>
    %44 = arith.extf %43 : vector<16x128xbf16> to vector<16x128xf32>
    %45 = arith.index_cast %6 : i32 to index
    %c640 = arith.constant 640 : index
    %46 = vector.load %arg2[%45, %c640] : memref<16x1280xbf16, #tpu.memory_space<vmem>>, vector<16x128xbf16>
    %47 = arith.extf %46 : vector<16x128xbf16> to vector<16x128xf32>
    %48 = arith.subf %41, %38 : vector<16x128xf32>
    %49 = arith.subf %47, %44 : vector<16x128xf32>
    %50 = arith.mulf %48, %48 : vector<16x128xf32>
    %51 = arith.mulf %49, %49 : vector<16x128xf32>
    %52 = arith.addf %50, %51 : vector<16x128xf32>
    %53 = arith.index_cast %6 : i32 to index
    %c256 = arith.constant 256 : index
    %54 = vector.load %arg2[%53, %c256] : memref<16x1280xbf16, #tpu.memory_space<vmem>>, vector<16x128xbf16>
    %55 = arith.extf %54 : vector<16x128xbf16> to vector<16x128xf32>
    %56 = arith.index_cast %6 : i32 to index
    %c768 = arith.constant 768 : index
    %57 = vector.load %arg2[%56, %c768] : memref<16x1280xbf16, #tpu.memory_space<vmem>>, vector<16x128xbf16>
    %58 = arith.extf %57 : vector<16x128xbf16> to vector<16x128xf32>
    %cst_10 = arith.constant 5.000000e-01 : f32
    %59 = vector.broadcast %cst_10 : f32 to vector<16x128xf32>
    %60 = arith.mulf %55, %59 : vector<16x128xf32>
    %cst_11 = arith.constant 5.000000e-01 : f32
    %61 = vector.broadcast %cst_11 : f32 to vector<16x128xf32>
    %62 = arith.mulf %58, %61 : vector<16x128xf32>
    %63 = arith.subf %38, %60 : vector<16x128xf32>
    %64 = arith.addf %38, %60 : vector<16x128xf32>
    %65 = arith.subf %41, %62 : vector<16x128xf32>
    %66 = arith.addf %41, %62 : vector<16x128xf32>
    %67 = arith.minimumf %64, %66 : vector<16x128xf32>
    %68 = arith.maximumf %63, %65 : vector<16x128xf32>
    %69 = arith.subf %67, %68 : vector<16x128xf32>
    %70 = arith.maximumf %64, %66 : vector<16x128xf32>
    %71 = arith.minimumf %63, %65 : vector<16x128xf32>
    %72 = arith.subf %70, %71 : vector<16x128xf32>
    %73 = arith.index_cast %6 : i32 to index
    %c384 = arith.constant 384 : index
    %74 = vector.load %arg2[%73, %c384] : memref<16x1280xbf16, #tpu.memory_space<vmem>>, vector<16x128xbf16>
    %75 = arith.extf %74 : vector<16x128xbf16> to vector<16x128xf32>
    %76 = arith.index_cast %6 : i32 to index
    %c896 = arith.constant 896 : index
    %77 = vector.load %arg2[%76, %c896] : memref<16x1280xbf16, #tpu.memory_space<vmem>>, vector<16x128xbf16>
    %78 = arith.extf %77 : vector<16x128xbf16> to vector<16x128xf32>
    %cst_12 = arith.constant 5.000000e-01 : f32
    %79 = vector.broadcast %cst_12 : f32 to vector<16x128xf32>
    %80 = arith.mulf %75, %79 : vector<16x128xf32>
    %cst_13 = arith.constant 5.000000e-01 : f32
    %81 = vector.broadcast %cst_13 : f32 to vector<16x128xf32>
    %82 = arith.mulf %78, %81 : vector<16x128xf32>
    %83 = arith.subf %44, %80 : vector<16x128xf32>
    %84 = arith.addf %44, %80 : vector<16x128xf32>
    %85 = arith.subf %47, %82 : vector<16x128xf32>
    %86 = arith.addf %47, %82 : vector<16x128xf32>
    %87 = arith.minimumf %84, %86 : vector<16x128xf32>
    %88 = arith.maximumf %83, %85 : vector<16x128xf32>
    %89 = arith.subf %87, %88 : vector<16x128xf32>
    %90 = arith.maximumf %84, %86 : vector<16x128xf32>
    %91 = arith.minimumf %83, %85 : vector<16x128xf32>
    %92 = arith.subf %90, %91 : vector<16x128xf32>
    %cst_14 = arith.constant 0.000000e+00 : f32
    %93 = vector.broadcast %cst_14 : f32 to vector<16x128xf32>
    %94 = arith.maximumf %69, %93 : vector<16x128xf32>
    %cst_15 = arith.constant 0.000000e+00 : f32
    %95 = vector.broadcast %cst_15 : f32 to vector<16x128xf32>
    %96 = arith.maximumf %89, %95 : vector<16x128xf32>
    %97 = arith.mulf %94, %96 : vector<16x128xf32>
    %98 = arith.mulf %55, %75 : vector<16x128xf32>
    %99 = arith.mulf %58, %78 : vector<16x128xf32>
    %100 = arith.addf %98, %99 : vector<16x128xf32>
    %101 = arith.subf %100, %97 : vector<16x128xf32>
    %cst_16 = arith.constant 1.000000e-10 : f32
    %102 = vector.broadcast %cst_16 : f32 to vector<16x128xf32>
    %103 = arith.addf %101, %102 : vector<16x128xf32>
    %104 = tpu.reciprocal %103 {approx = true} : vector<16x128xf32> -> vector<16x128xf32>
    %105 = arith.mulf %97, %104 : vector<16x128xf32>
    %106 = arith.mulf %72, %72 : vector<16x128xf32>
    %107 = arith.mulf %92, %92 : vector<16x128xf32>
    %108 = arith.addf %106, %107 : vector<16x128xf32>
    %cst_17 = arith.constant 1.000000e-10 : f32
    %109 = vector.broadcast %cst_17 : f32 to vector<16x128xf32>
    %110 = arith.addf %108, %109 : vector<16x128xf32>
    %111 = tpu.reciprocal %110 {approx = true} : vector<16x128xf32> -> vector<16x128xf32>
    %112 = arith.mulf %52, %111 : vector<16x128xf32>
    %cst_18 = arith.constant 1.000000e-10 : f32
    %113 = vector.broadcast %cst_18 : f32 to vector<16x128xf32>
    %114 = arith.addf %78, %113 : vector<16x128xf32>
    %115 = tpu.reciprocal %114 {approx = true} : vector<16x128xf32> -> vector<16x128xf32>
    %116 = arith.mulf %58, %115 : vector<16x128xf32>
    %cst_19 = arith.constant 1.000000e-10 : f32
    %117 = vector.broadcast %cst_19 : f32 to vector<16x128xf32>
    %118 = arith.addf %75, %117 : vector<16x128xf32>
    %119 = tpu.reciprocal %118 {approx = true} : vector<16x128xf32> -> vector<16x128xf32>
    %120 = arith.mulf %55, %119 : vector<16x128xf32>
    %cst_20 = arith.constant 2.41421366 : f32
    %121 = vector.broadcast %cst_20 : f32 to vector<16x128xf32>
    %122 = arith.cmpf ogt, %116, %121 : vector<16x128xf32>
    %cst_21 = arith.constant 0.414213568 : f32
    %123 = vector.broadcast %cst_21 : f32 to vector<16x128xf32>
    %124 = arith.cmpf ogt, %116, %123 : vector<16x128xf32>
    %cst_22 = arith.constant 1.000000e+00 : f32
    %125 = vector.broadcast %cst_22 : f32 to vector<16x128xf32>
    %126 = arith.subf %116, %125 : vector<16x128xf32>
    %127 = arith.select %124, %126, %116 : vector<16x128xi1>, vector<16x128xf32>
    %cst_23 = arith.constant -1.000000e+00 : f32
    %128 = vector.broadcast %cst_23 : f32 to vector<16x128xf32>
    %129 = arith.select %122, %128, %127 : vector<16x128xi1>, vector<16x128xf32>
    %cst_24 = arith.constant 1.000000e+00 : f32
    %130 = vector.broadcast %cst_24 : f32 to vector<16x128xf32>
    %131 = arith.addf %116, %130 : vector<16x128xf32>
    %cst_25 = arith.constant 1.000000e+00 : f32
    %132 = vector.broadcast %cst_25 : f32 to vector<16x128xf32>
    %133 = arith.select %124, %131, %132 : vector<16x128xi1>, vector<16x128xf32>
    %134 = arith.select %122, %116, %133 : vector<16x128xi1>, vector<16x128xf32>
    %135 = tpu.reciprocal %134 {approx = true} : vector<16x128xf32> -> vector<16x128xf32>
    %136 = arith.mulf %129, %135 : vector<16x128xf32>
    %cst_26 = arith.constant 0.785398185 : f32
    %cst_27 = arith.constant 0.000000e+00 : f32
    %137 = vector.broadcast %cst_26 : f32 to vector<16x128xf32>
    %138 = vector.broadcast %cst_27 : f32 to vector<16x128xf32>
    %139 = arith.select %124, %137, %138 : vector<16x128xi1>, vector<16x128xf32>
    %cst_28 = arith.constant 1.57079637 : f32
    %140 = vector.broadcast %cst_28 : f32 to vector<16x128xf32>
    %141 = arith.select %122, %140, %139 : vector<16x128xi1>, vector<16x128xf32>
    %142 = arith.mulf %136, %136 : vector<16x128xf32>
    %cst_29 = arith.constant 0.0805374458 : f32
    %143 = vector.broadcast %cst_29 : f32 to vector<16x128xf32>
    %144 = arith.mulf %143, %142 : vector<16x128xf32>
    %cst_30 = arith.constant 0.138776854 : f32
    %145 = vector.broadcast %cst_30 : f32 to vector<16x128xf32>
    %146 = arith.subf %144, %145 : vector<16x128xf32>
    %147 = arith.mulf %146, %142 : vector<16x128xf32>
    %cst_31 = arith.constant 0.199777111 : f32
    %148 = vector.broadcast %cst_31 : f32 to vector<16x128xf32>
    %149 = arith.addf %147, %148 : vector<16x128xf32>
    %150 = arith.mulf %149, %142 : vector<16x128xf32>
    %cst_32 = arith.constant 0.333329499 : f32
    %151 = vector.broadcast %cst_32 : f32 to vector<16x128xf32>
    %152 = arith.subf %150, %151 : vector<16x128xf32>
    %153 = arith.mulf %152, %142 : vector<16x128xf32>
    %154 = arith.mulf %153, %136 : vector<16x128xf32>
    %155 = arith.addf %141, %154 : vector<16x128xf32>
    %156 = arith.addf %155, %136 : vector<16x128xf32>
    %cst_33 = arith.constant 2.41421366 : f32
    %157 = vector.broadcast %cst_33 : f32 to vector<16x128xf32>
    %158 = arith.cmpf ogt, %120, %157 : vector<16x128xf32>
    %cst_34 = arith.constant 0.414213568 : f32
    %159 = vector.broadcast %cst_34 : f32 to vector<16x128xf32>
    %160 = arith.cmpf ogt, %120, %159 : vector<16x128xf32>
    %cst_35 = arith.constant 1.000000e+00 : f32
    %161 = vector.broadcast %cst_35 : f32 to vector<16x128xf32>
    %162 = arith.subf %120, %161 : vector<16x128xf32>
    %163 = arith.select %160, %162, %120 : vector<16x128xi1>, vector<16x128xf32>
    %cst_36 = arith.constant -1.000000e+00 : f32
    %164 = vector.broadcast %cst_36 : f32 to vector<16x128xf32>
    %165 = arith.select %158, %164, %163 : vector<16x128xi1>, vector<16x128xf32>
    %cst_37 = arith.constant 1.000000e+00 : f32
    %166 = vector.broadcast %cst_37 : f32 to vector<16x128xf32>
    %167 = arith.addf %120, %166 : vector<16x128xf32>
    %cst_38 = arith.constant 1.000000e+00 : f32
    %168 = vector.broadcast %cst_38 : f32 to vector<16x128xf32>
    %169 = arith.select %160, %167, %168 : vector<16x128xi1>, vector<16x128xf32>
    %170 = arith.select %158, %120, %169 : vector<16x128xi1>, vector<16x128xf32>
    %171 = tpu.reciprocal %170 {approx = true} : vector<16x128xf32> -> vector<16x128xf32>
    %172 = arith.mulf %165, %171 : vector<16x128xf32>
    %cst_39 = arith.constant 0.785398185 : f32
    %cst_40 = arith.constant 0.000000e+00 : f32
    %173 = vector.broadcast %cst_39 : f32 to vector<16x128xf32>
    %174 = vector.broadcast %cst_40 : f32 to vector<16x128xf32>
    %175 = arith.select %160, %173, %174 : vector<16x128xi1>, vector<16x128xf32>
    %cst_41 = arith.constant 1.57079637 : f32
    %176 = vector.broadcast %cst_41 : f32 to vector<16x128xf32>
    %177 = arith.select %158, %176, %175 : vector<16x128xi1>, vector<16x128xf32>
    %178 = arith.mulf %172, %172 : vector<16x128xf32>
    %cst_42 = arith.constant 0.0805374458 : f32
    %179 = vector.broadcast %cst_42 : f32 to vector<16x128xf32>
    %180 = arith.mulf %179, %178 : vector<16x128xf32>
    %cst_43 = arith.constant 0.138776854 : f32
    %181 = vector.broadcast %cst_43 : f32 to vector<16x128xf32>
    %182 = arith.subf %180, %181 : vector<16x128xf32>
    %183 = arith.mulf %182, %178 : vector<16x128xf32>
    %cst_44 = arith.constant 0.199777111 : f32
    %184 = vector.broadcast %cst_44 : f32 to vector<16x128xf32>
    %185 = arith.addf %183, %184 : vector<16x128xf32>
    %186 = arith.mulf %185, %178 : vector<16x128xf32>
    %cst_45 = arith.constant 0.333329499 : f32
    %187 = vector.broadcast %cst_45 : f32 to vector<16x128xf32>
    %188 = arith.subf %186, %187 : vector<16x128xf32>
    %189 = arith.mulf %188, %178 : vector<16x128xf32>
    %190 = arith.mulf %189, %172 : vector<16x128xf32>
    %191 = arith.addf %177, %190 : vector<16x128xf32>
    %192 = arith.addf %191, %172 : vector<16x128xf32>
    %193 = arith.subf %156, %192 : vector<16x128xf32>
    %cst_46 = arith.constant 4.052800e-01 : f32
    %194 = vector.broadcast %cst_46 : f32 to vector<16x128xf32>
    %195 = arith.mulf %194, %193 : vector<16x128xf32>
    %196 = arith.mulf %195, %193 : vector<16x128xf32>
    %cst_47 = arith.constant 1.000000e+00 : f32
    %197 = vector.broadcast %cst_47 : f32 to vector<16x128xf32>
    %198 = arith.subf %197, %105 : vector<16x128xf32>
    %199 = arith.addf %198, %196 : vector<16x128xf32>
    %200 = tpu.reciprocal %199 {approx = true} : vector<16x128xf32> -> vector<16x128xf32>
    %201 = arith.mulf %196, %200 : vector<16x128xf32>
    %cst_48 = arith.constant 1.000000e+00 : f32
    %202 = vector.broadcast %cst_48 : f32 to vector<16x128xf32>
    %203 = arith.subf %202, %105 : vector<16x128xf32>
    %204 = arith.addf %203, %112 : vector<16x128xf32>
    %205 = arith.mulf %201, %196 : vector<16x128xf32>
    %206 = arith.addf %204, %205 : vector<16x128xf32>
    %cst_49 = arith.constant 5.000000e+00 : f32
    %207 = vector.broadcast %cst_49 : f32 to vector<16x128xf32>
    %208 = arith.mulf %207, %14 : vector<16x128xf32>
    %209 = arith.mulf %208, %206 : vector<16x128xf32>
    %210 = arith.addf %35, %209 : vector<16x128xf32>
    %c0_50 = arith.constant 0 : index
    %c0_51 = arith.constant 0 : index
    %211 = vector.load %arg4[%c0_50, %c0_51] : memref<8x128xf32, #tpu.memory_space<vmem>>, vector<8x128xf32>
    %212 = vector.shape_cast %210 : vector<16x128xf32> to vector<2x8x128xf32>
    %cst_52 = arith.constant dense<0.000000e+00> : vector<8x128xf32>
    %213 = vector.multi_reduction <add>, %212, %cst_52 [0] : vector<2x8x128xf32> to vector<8x128xf32>
    %214 = arith.addf %211, %213 : vector<8x128xf32>
    %c0_53 = arith.constant 0 : index
    %c0_54 = arith.constant 0 : index
    %215 = vector.load %arg4[%c0_53, %c0_54] : memref<8x128xf32, #tpu.memory_space<vmem>>, vector<8x128xf32>
    tpu.vector_store %arg4[%c0_53, %c0_54], %214 {strides = array<i32>} : memref<8x128xf32, #tpu.memory_space<vmem>>, vector<8x128xf32>,
    %c1_i32_55 = arith.constant 1 : i32
    return
  }
  func.func @transform_0(%arg0: i32, %arg1: i32) -> (i32, i32) {
    %c1_i32 = arith.constant 1 : i32
    %0 = arith.muli %arg0, %c1_i32 : i32
    %1 = arith.addi %0, %arg1 : i32
    %c0_i32 = arith.constant 0 : i32
    %c0_i32_0 = arith.constant 0 : i32
    return %1, %c0_i32 : i32, i32
  }
  func.func @transform_1(%arg0: i32, %arg1: i32) -> (i32, i32) {
    %c1_i32 = arith.constant 1 : i32
    %0 = arith.muli %arg0, %c1_i32 : i32
    %1 = arith.addi %0, %arg1 : i32
    %c0_i32 = arith.constant 0 : i32
    %c0_i32_0 = arith.constant 0 : i32
    return %1, %c0_i32 : i32, i32
  }
  func.func @transform_2(%arg0: i32, %arg1: i32) -> (i32, i32) {
    %c0_i32 = arith.constant 0 : i32
    %c0_i32_0 = arith.constant 0 : i32
    return %arg0, %c0_i32 : i32, i32
  }
}

</mosaic_0001>

<llo_original>
// kernel: yolo_loss.1
$region0: #{yolo_loss.1}
  #allocation0 [shape = 'u32[]', space=smem, size = 0x4, offset = 0x4, fixed_abs, tag = 'smem constant byte address 0x4 - core index']
  #allocation1 [shape = 'u32[144,128]{1,0:T(1,128)}', space=vmem, size = 0x12000, scoped, tag = 'internal scratch']
  %s0 = inlined_call_operand.vmem [shape: bf16[16,1280], index: 0, kind: input, shape index: {}]
  %s1 = inlined_call_operand.vmem [shape: f32[16,128], index: 1, kind: input, shape index: {}]
  %s2 = inlined_call_operand.vmem [shape: f32[8,128], index: 2, kind: output, shape index: {}]
  %s3 = sld [smem:[#allocation0]]
  $region22: #{yolo_loss.1} parent=0
    _
  %s5 = ssub.s32 1, %s3
  %s6 = scalar_select 0, %s5, %s3
  // Predicated region
  $region2: #{yolo_loss.1} parent=0 // pred_check
    _
  $region3: #{yolo_loss.1} parent=0 // pred_check_branch
    %8 = sbr.rel (0) target = $region5
  $region4: #{yolo_loss.1} parent=0 // pred_region
    %s9 = sadd.s32 0, 0
    %s10 = smul.u32 2, %s9
    %p11 = scmp.lt.s32.totalorder %s10, 1
    %s12 = scalar_select %p11, %s10, 1
    %s13 = smul.addr %s12, 10
    %s14 = smul.addr %s13, 4
    %s15 = scalar_lea.vmem %s0, %s14
    %s16 = sadd.s32 0, 0
    %s17 = smul.u32 2, %s16
  $region5: #{yolo_loss.1} parent=0 // pred_fallthru
    _
  // Predicated region
  $region6: #{yolo_loss.1} parent=0 // pred_check
    _
  $region7: #{yolo_loss.1} parent=0 // pred_check_branch
    %19 = sbr.rel (0) target = $region9
  $region8: #{yolo_loss.1} parent=0 // pred_region
    %s20 = sadd.s32 0, 0
    %s21 = smul.u32 2, %s20
    %p22 = scmp.lt.s32.totalorder %s21, 1
    %s23 = scalar_select %p22, %s21, 1
    %s24 = smul.addr %s23, 8
    %s25 = scalar_lea.vmem %s1, %s24
    %s26 = sadd.s32 0, 0
    %s27 = smul.u32 2, %s26
  $region9: #{yolo_loss.1} parent=0 // pred_fallthru
    _
  %s28 = sadd.s32 0, 0
  %s29 = smul.u32 2, %s28
  %p30 = scmp.lt.s32.totalorder %s29, 1
  %s31 = scalar_select %p30, %s29, 1
  %s32 = smul.addr %s31, 10
  %s33 = smul.addr %s32, 4
  %s34 = scalar_lea.vmem %s0, %s33
  %s35 = sadd.s32 0, 0
  %s36 = smul.u32 2, %s35
  %p37 = scmp.lt.s32.totalorder %s36, 1
  %s38 = scalar_select %p37, %s36, 1
  %s39 = smul.addr %s38, 8
  %s40 = scalar_lea.vmem %s1, %s39
  %s41 = sadd.s32 0, 0
  %s42 = smul.u32 2, %s41
  %p43 = scmp.lt.s32.totalorder %s42, 1
  %s44 = scalar_select %p43, %s42, 1
  %s45 = smul.addr %s44, 10
  %s46 = smul.addr %s45, 4
  %s47 = scalar_lea.vmem %s0, %s46
  %s48 = sadd.s32 0, 0
  %s49 = smul.u32 2, %s48
  %s50 = sadd.s32 0, 0
  %s51 = smul.u32 2, %s50
  %p52 = scmp.lt.s32.totalorder %s51, 1
  %s53 = scalar_select %p52, %s51, 1
  %s54 = smul.addr %s53, 8
  %s55 = scalar_lea.vmem %s1, %s54
  %s56 = sadd.s32 0, 0
  %s57 = smul.u32 2, %s56
  %p58 = scmp.eq.s32.totalorder 0, 0
  // Predicated region
  $region10: #{yolo_loss.1} parent=0 // pred_check
    %p59 = pneg %p58
  $region11: #{yolo_loss.1} parent=0 // pred_check_branch
    %61 = sbr.rel (%p59) target = $region13
  $region12: #{yolo_loss.1} parent=0 // pred_region
    %62 = vst [vmem:[%s2] sm:$0xff] 0.0
  $region13: #{yolo_loss.1} parent=0 // pred_fallthru
    _
  %v63 = vld [vmem:[%s55] sm:$0xff]
  %v64 = vld [vmem:[%s55 + $0x8] sm:$0xff]
  %s65 = smul.u32 0, 10
  %s66 = smul.addr %s65, 4
  %s67 = scalar_lea.vmem %s47, %s66
  %v68 = vld [vmem:[%s67 + $0x20] sm:$0xf]
  %v69 = vld [vmem:[%s67 + $0x48] sm:$0xf]
  %v70 = vunpack.c.l.bf16 %v68
  %v71 = vunpack.c.l.bf16 %v69
  %v72 = vld [vmem:[%s67 + $0x24] sm:$0xf]
  %v73 = vld [vmem:[%s67 + $0x4c] sm:$0xf]
  %v74 = vunpack.c.l.bf16 %v72
  %v75 = vunpack.c.l.bf16 %v73
  %v76 = vlog2.pop %v63
  %v77 = vmul.f32 %v76, 0.6931472
  %v78 = vlog2.pop %v64
  %v79 = vmul.f32 %v78, 0.6931472
  %v80 = vmax.f32 %v77, -100.0
  %v81 = vmax.f32 %v79, -100.0
  %v82 = vsub.f32 1.0, %v63
  %v83 = vsub.f32 1.0, %v64
  %v84 = vlog2.pop %v82
  %v85 = vmul.f32 %v84, 0.6931472
  %v86 = vlog2.pop %v83
  %v87 = vmul.f32 %v86, 0.6931472
  %v88 = vmax.f32 %v85, -100.0
  %v89 = vmax.f32 %v87, -100.0
  %v90 = vmul.f32 %v70, %v80
  %v91 = vmul.f32 %v71, %v81
  %v92 = vsub.f32 1.0, %v70
  %v93 = vsub.f32 1.0, %v71
  %v94 = vmul.f32 %v92, %v88
  %v95 = vmul.f32 %v93, %v89
  %v96 = vadd.f32 %v90, %v94
  %v97 = vadd.f32 %v91, %v95
  %v98 = vsub.f32 0.0, %v96
  %v99 = vsub.f32 0.0, %v97
  %v100 = vsub.f32 1.0, %v74
  %v101 = vsub.f32 1.0, %v75
  %v102 = vmul.f32 %v100, 0.5
  %v103 = vmul.f32 %v101, 0.5
  %v104 = vadd.f32 %v74, %v102
  %v105 = vadd.f32 %v75, %v103
  %v106 = vmul.f32 %v104, %v98
  %v107 = vmul.f32 %v105, %v99
  %v108 = vld [vmem:[%s67] sm:$0xf]
  %v109 = vld [vmem:[%s67 + $0x28] sm:$0xf]
  %v110 = vunpack.c.l.bf16 %v108
  %v111 = vunpack.c.l.bf16 %v109
  %v112 = vld [vmem:[%s67 + $0x10] sm:$0xf]
  %v113 = vld [vmem:[%s67 + $0x38] sm:$0xf]
  %v114 = vunpack.c.l.bf16 %v112
  %v115 = vunpack.c.l.bf16 %v113
  %v116 = vld [vmem:[%s67 + $0x4] sm:$0xf]
  %v117 = vld [vmem:[%s67 + $0x2c] sm:$0xf]
  %v118 = vunpack.c.l.bf16 %v116
  %v119 = vunpack.c.l.bf16 %v117
  %v120 = vld [vmem:[%s67 + $0x14] sm:$0xf]
  %v121 = vld [vmem:[%s67 + $0x3c] sm:$0xf]
  %v122 = vunpack.c.l.bf16 %v120
  %v123 = vunpack.c.l.bf16 %v121
  %v124 = vsub.f32 %v114, %v110
  %v125 = vsub.f32 %v115, %v111
  %v126 = vsub.f32 %v122, %v118
  %v127 = vsub.f32 %v123, %v119
  %v128 = vmul.f32 %v124, %v124
  %v129 = vmul.f32 %v125, %v125
  %v130 = vmul.f32 %v126, %v126
  %v131 = vmul.f32 %v127, %v127
  %v132 = vadd.f32 %v128, %v130
  %v133 = vadd.f32 %v129, %v131
  %v134 = vld [vmem:[%s67 + $0x8] sm:$0xf]
  %v135 = vld [vmem:[%s67 + $0x30] sm:$0xf]
  %v136 = vunpack.c.l.bf16 %v134
  %v137 = vunpack.c.l.bf16 %v135
  %v138 = vld [vmem:[%s67 + $0x18] sm:$0xf]
  %v139 = vld [vmem:[%s67 + $0x40] sm:$0xf]
  %v140 = vunpack.c.l.bf16 %v138
  %v141 = vunpack.c.l.bf16 %v139
  %v142 = vmul.f32 %v136, 0.5
  %v143 = vmul.f32 %v137, 0.5
  %v144 = vmul.f32 %v140, 0.5
  %v145 = vmul.f32 %v141, 0.5
  %v146 = vsub.f32 %v110, %v142
  %v147 = vsub.f32 %v111, %v143
  %v148 = vadd.f32 %v110, %v142
  %v149 = vadd.f32 %v111, %v143
  %v150 = vsub.f32 %v114, %v144
  %v151 = vsub.f32 %v115, %v145
  %v152 = vadd.f32 %v114, %v144
  %v153 = vadd.f32 %v115, %v145
  %v154 = vmin.f32 %v148, %v152
  %v155 = vmin.f32 %v149, %v153
  %v156 = vmax.f32 %v146, %v150
  %v157 = vmax.f32 %v147, %v151
  %v158 = vsub.f32 %v154, %v156
  %v159 = vsub.f32 %v155, %v157
  %v160 = vmax.f32 %v148, %v152
  %v161 = vmax.f32 %v149, %v153
  %v162 = vmin.f32 %v146, %v150
  %v163 = vmin.f32 %v147, %v151
  %v164 = vsub.f32 %v160, %v162
  %v165 = vsub.f32 %v161, %v163
  %v166 = vld [vmem:[%s67 + $0xc] sm:$0xf]
  %v167 = vld [vmem:[%s67 + $0x34] sm:$0xf]
  %v168 = vunpack.c.l.bf16 %v166
  %v169 = vunpack.c.l.bf16 %v167
  %v170 = vld [vmem:[%s67 + $0x1c] sm:$0xf]
  %v171 = vld [vmem:[%s67 + $0x44] sm:$0xf]
  %v172 = vunpack.c.l.bf16 %v170
  %v173 = vunpack.c.l.bf16 %v171
  %v174 = vmul.f32 %v168, 0.5
  %v175 = vmul.f32 %v169, 0.5
  %v176 = vmul.f32 %v172, 0.5
  %v177 = vmul.f32 %v173, 0.5
  %v178 = vsub.f32 %v118, %v174
  %v179 = vsub.f32 %v119, %v175
  %v180 = vadd.f32 %v118, %v174
  %v181 = vadd.f32 %v119, %v175
  %v182 = vsub.f32 %v122, %v176
  %v183 = vsub.f32 %v123, %v177
  %v184 = vadd.f32 %v122, %v176
  %v185 = vadd.f32 %v123, %v177
  %v186 = vmin.f32 %v180, %v184
  %v187 = vmin.f32 %v181, %v185
  %v188 = vmax.f32 %v178, %v182
  %v189 = vmax.f32 %v179, %v183
  %v190 = vsub.f32 %v186, %v188
  %v191 = vsub.f32 %v187, %v189
  %v192 = vmax.f32 %v180, %v184
  %v193 = vmax.f32 %v181, %v185
  %v194 = vmin.f32 %v178, %v182
  %v195 = vmin.f32 %v179, %v183
  %v196 = vsub.f32 %v192, %v194
  %v197 = vsub.f32 %v193, %v195
  %v198 = vmax.f32 %v158, 0.0
  %v199 = vmax.f32 %v159, 0.0
  %v200 = vmax.f32 %v190, 0.0
  %v201 = vmax.f32 %v191, 0.0
  %v202 = vmul.f32 %v198, %v200
  %v203 = vmul.f32 %v199, %v201
  %v204 = vmul.f32 %v136, %v168
  %v205 = vmul.f32 %v137, %v169
  %v206 = vmul.f32 %v140, %v172
  %v207 = vmul.f32 %v141, %v173
  %v208 = vadd.f32 %v204, %v206
  %v209 = vadd.f32 %v205, %v207
  %v210 = vsub.f32 %v208, %v202
  %v211 = vsub.f32 %v209, %v203
  %v212 = vadd.f32 %v210, 1e-10
  %v213 = vadd.f32 %v211, 1e-10
  %v214 = vrcp.pop %v212
  %v215 = vrcp.pop %v213
  %v216 = vmul.f32 %v202, %v214
  %v217 = vmul.f32 %v203, %v215
  %v218 = vmul.f32 %v164, %v164
  %v219 = vmul.f32 %v165, %v165
  %v220 = vmul.f32 %v196, %v196
  %v221 = vmul.f32 %v197, %v197
  %v222 = vadd.f32 %v218, %v220
  %v223 = vadd.f32 %v219, %v221
  %v224 = vadd.f32 %v222, 1e-10
  %v225 = vadd.f32 %v223, 1e-10
  %v226 = vrcp.pop %v224
  %v227 = vrcp.pop %v225
  %v228 = vmul.f32 %v132, %v226
  %v229 = vmul.f32 %v133, %v227
  %v230 = vadd.f32 %v172, 1e-10
  %v231 = vadd.f32 %v173, 1e-10
  %v232 = vrcp.pop %v230
  %v233 = vrcp.pop %v231
  %v234 = vmul.f32 %v140, %v232
  %v235 = vmul.f32 %v141, %v233
  %v236 = vadd.f32 %v168, 1e-10
  %v237 = vadd.f32 %v169, 1e-10
  %v238 = vrcp.pop %v236
  %v239 = vrcp.pop %v237
  %v240 = vmul.f32 %v136, %v238
  %v241 = vmul.f32 %v137, %v239
  %vm242 = vcmp.gt.f32.partialorder %v234, 2.4142137
  %vm243 = vcmp.gt.f32.partialorder %v235, 2.4142137
  %vm244 = vcmp.gt.f32.partialorder %v234, 0.41421357
  %vm245 = vcmp.gt.f32.partialorder %v235, 0.41421357
  %v246 = vsub.f32 %v234, 1.0
  %v247 = vsub.f32 %v235, 1.0
  %v248 = vsel %vm244, %v246, %v234
  %v249 = vsel %vm245, %v247, %v235
  %v250 = vsel %vm242, -1.0, %v248
  %v251 = vsel %vm243, -1.0, %v249
  %v252 = vadd.f32 %v234, 1.0
  %v253 = vadd.f32 %v235, 1.0
  %v254 = vsel %vm244, %v252, 1.0
  %v255 = vsel %vm245, %v253, 1.0
  %v256 = vsel %vm242, %v234, %v254
  %v257 = vsel %vm243, %v235, %v255
  %v258 = vrcp.pop %v256
  %v259 = vrcp.pop %v257
  %v260 = vmul.f32 %v250, %v258
  %v261 = vmul.f32 %v251, %v259
  %v262 = vsel %vm244, 0.7853982, 0.0
  %v263 = vsel %vm245, 0.7853982, 0.0
  %v264 = vsel %vm242, 1.5707964, %v262
  %v265 = vsel %vm243, 1.5707964, %v263
  %v266 = vmul.f32 %v260, %v260
  %v267 = vmul.f32 %v261, %v261
  %v268 = vmul.f32 %v266, 0.080537446
  %v269 = vmul.f32 %v267, 0.080537446
  %v270 = vsub.f32 %v268, 0.13877685
  %v271 = vsub.f32 %v269, 0.13877685
  %v272 = vmul.f32 %v270, %v266
  %v273 = vmul.f32 %v271, %v267
  %v274 = vadd.f32 %v272, 0.19977711
  %v275 = vadd.f32 %v273, 0.19977711
  %v276 = vmul.f32 %v274, %v266
  %v277 = vmul.f32 %v275, %v267
  %v278 = vsub.f32 %v276, 0.3333295
  %v279 = vsub.f32 %v277, 0.3333295
  %v280 = vmul.f32 %v278, %v266
  %v281 = vmul.f32 %v279, %v267
  %v282 = vmul.f32 %v280, %v260
  %v283 = vmul.f32 %v281, %v261
  %v284 = vadd.f32 %v264, %v282
  %v285 = vadd.f32 %v265, %v283
  %v286 = vadd.f32 %v284, %v260
  %v287 = vadd.f32 %v285, %v261
  %vm288 = vcmp.gt.f32.partialorder %v240, 2.4142137
  %vm289 = vcmp.gt.f32.partialorder %v241, 2.4142137
  %vm290 = vcmp.gt.f32.partialorder %v240, 0.41421357
  %vm291 = vcmp.gt.f32.partialorder %v241, 0.41421357
  %v292 = vsub.f32 %v240, 1.0
  %v293 = vsub.f32 %v241, 1.0
  %v294 = vsel %vm290, %v292, %v240
  %v295 = vsel %vm291, %v293, %v241
  %v296 = vsel %vm288, -1.0, %v294
  %v297 = vsel %vm289, -1.0, %v295
  %v298 = vadd.f32 %v240, 1.0
  %v299 = vadd.f32 %v241, 1.0
  %v300 = vsel %vm290, %v298, 1.0
  %v301 = vsel %vm291, %v299, 1.0
  %v302 = vsel %vm288, %v240, %v300
  %v303 = vsel %vm289, %v241, %v301
  %v304 = vrcp.pop %v302
  %v305 = vrcp.pop %v303
  %v306 = vmul.f32 %v296, %v304
  %v307 = vmul.f32 %v297, %v305
  %v308 = vsel %vm290, 0.7853982, 0.0
  %v309 = vsel %vm291, 0.7853982, 0.0
  %v310 = vsel %vm288, 1.5707964, %v308
  %v311 = vsel %vm289, 1.5707964, %v309
  %v312 = vmul.f32 %v306, %v306
  %v313 = vmul.f32 %v307, %v307
  %v314 = vmul.f32 %v312, 0.080537446
  %v315 = vmul.f32 %v313, 0.080537446
  %v316 = vsub.f32 %v314, 0.13877685
  %v317 = vsub.f32 %v315, 0.13877685
  %v318 = vmul.f32 %v316, %v312
  %v319 = vmul.f32 %v317, %v313
  %v320 = vadd.f32 %v318, 0.19977711
  %v321 = vadd.f32 %v319, 0.19977711
  %v322 = vmul.f32 %v320, %v312
  %v323 = vmul.f32 %v321, %v313
  %v324 = vsub.f32 %v322, 0.3333295
  %v325 = vsub.f32 %v323, 0.3333295
  %v326 = vmul.f32 %v324, %v312
  %v327 = vmul.f32 %v325, %v313
  %v328 = vmul.f32 %v326, %v306
  %v329 = vmul.f32 %v327, %v307
  %v330 = vadd.f32 %v310, %v328
  %v331 = vadd.f32 %v311, %v329
  %v332 = vadd.f32 %v330, %v306
  %v333 = vadd.f32 %v331, %v307
  %v334 = vsub.f32 %v286, %v332
  %v335 = vsub.f32 %v287, %v333
  %v336 = vmul.f32 %v334, 0.40528
  %v337 = vmul.f32 %v335, 0.40528
  %v338 = vmul.f32 %v336, %v334
  %v339 = vmul.f32 %v337, %v335
  %v340 = vsub.f32 1.0, %v216
  %v341 = vsub.f32 1.0, %v217
  %v342 = vadd.f32 %v340, %v338
  %v343 = vadd.f32 %v341, %v339
  %v344 = vrcp.pop %v342
  %v345 = vrcp.pop %v343
  %v346 = vmul.f32 %v338, %v344
  %v347 = vmul.f32 %v339, %v345
  %v348 = vadd.f32 %v340, %v228
  %v349 = vadd.f32 %v341, %v229
  %v350 = vmul.f32 %v346, %v338
  %v351 = vmul.f32 %v347, %v339
  %v352 = vadd.f32 %v348, %v350
  %v353 = vadd.f32 %v349, %v351
  %v354 = vmul.f32 %v74, 5.0
  %v355 = vmul.f32 %v75, 5.0
  %v356 = vmul.f32 %v354, %v352
  %v357 = vmul.f32 %v355, %v353
  %v358 = vadd.f32 %v106, %v356
  %v359 = vadd.f32 %v107, %v357
  %v360 = vld [vmem:[%s2] sm:$0xff]
  %v361 = vadd.f32 %v358, %v359
  %v362 = vadd.f32 %v360, %v361
  %363 = vst [vmem:[%s2] sm:$0xff] %v362
  // Predicated region
  $region14: #{yolo_loss.1} parent=0 // pred_check
    _
  $region15: #{yolo_loss.1} parent=0 // pred_check_branch
    %365 = sbr.rel (0) target = $region17
  $region16: #{yolo_loss.1} parent=0 // pred_region
    _
  $region17: #{yolo_loss.1} parent=0 // pred_fallthru
    _
  // Predicated region
  $region18: #{yolo_loss.1} parent=0 // pred_check
    _
  $region19: #{yolo_loss.1} parent=0 // pred_check_branch
    %367 = sbr.rel (0) target = $region21
  $region20: #{yolo_loss.1} parent=0 // pred_region
    _
  $region21: #{yolo_loss.1} parent=0 // pred_fallthru
    _

</llo_original>
